<compile_context>
chip_gen: v5e
topology: v5e:2x2
jax: 0.10.0
libtpu: 0.0.40
codegen_flags: <defaults>
</compile_context>

<pallas_src>
import functools

import jax
import jax.numpy as jnp
import numpy as np
from jax.experimental import pallas as pl
from jax.experimental.pallas import tpu as pltpu


def _upsample_conv_kernel(x_ref, w_ref, b_ref, o_ref, *, H, Wp_cin, apply_relu):
    # x_ref: (NB, H+2, (W+2)*Cin)        bf16, halo-padded NHWC with (w, c) in lanes
    # w_ref: (3, (W+2)*Cin, r*W*r*Cin)   bf16 Toeplitz weight, columns (ry, w, rx, cin)
    # b_ref: (1, r*W*r*Cin)              f32 bias, same column order
    # o_ref: (NB*H, r*W*r*Cin)           bf16 conv output, lane-dense last dim
    NB = x_ref.shape[0]

    # Three accumulated MXU dots (one per kernel row dy), f32 accumulation.
    lhs0 = x_ref[:, 0:H, :].reshape(NB * H, Wp_cin)
    acc = jnp.dot(lhs0, w_ref[0], preferred_element_type=jnp.float32)
    for dy in range(1, 3):
        lhs = x_ref[:, dy:dy + H, :].reshape(NB * H, Wp_cin)
        acc = acc + jnp.dot(lhs, w_ref[dy], preferred_element_type=jnp.float32)

    acc = acc + b_ref[...]
    if apply_relu:
        # ReLU commutes with PixelShuffle (elementwise), so applying it here
        # matches the PyTorch module (ReLU after pixel shuffle).
        acc = jnp.maximum(acc, 0.0)
    o_ref[...] = acc.astype(o_ref.dtype)   # bf16, unmasked lane-dense store


def _toeplitz_weight(weight_hwio, W, r):
    """Expand (3,3,Cin,Cin*r*r) HWIO conv weight into (3, (W+2)*Cin, r*W*r*Cin).

    Rows (per dy): (w_pad, cin_in).  Columns: (ry, w, rx, c_out) -- i.e. the
    PixelShuffle permutation is baked into the column order, so the matmul
    output is already the upscaled NHWC row layout.
    """
    Kh, Kw, Cin, Cout = weight_hwio.shape
    assert Cout == Cin * r * r
    # Split cout axis as (c_out, ry, rx): cout = c_out*r*r + ry*r + rx.
    w6 = weight_hwio.reshape(Kh, Kw, Cin, Cin, r, r)      # (dy, dx, cin, c_out, ry, rx)
    wp = jnp.arange(W + 2)[None, :]                       # padded column index
    wo = jnp.arange(W)[:, None]                           # output column index
    dx = wp - wo                                          # (W, W+2)
    valid = (dx >= 0) & (dx < Kw)
    g = w6[:, jnp.clip(dx, 0, Kw - 1)]                    # (dy, w, w_pad, cin, c_out, ry, rx)
    g = jnp.where(valid[None, :, :, None, None, None, None], g, 0.0)
    # -> (dy, w_pad, cin, ry, w, rx, c_out)
    t = jnp.transpose(g, (0, 2, 3, 5, 1, 6, 4))
    return t.reshape(Kh, (W + 2) * Cin, r * W * r * Cin)


def _tiled_bias(bias, W, r, Cin):
    """Bias tiled over columns in (ry, w, rx, c_out) order; shape (1, r*W*r*Cin)."""
    b3 = bias.reshape(Cin, r, r)                          # (c_out, ry, rx)
    bcols = jnp.transpose(b3, (1, 2, 0))                  # (ry, rx, c_out)
    b = jnp.broadcast_to(bcols[:, None, :, :], (r, W, r, Cin))
    return b.reshape(1, r * W * r * Cin).astype(jnp.float32)


def _round_up(x, m):
    return ((x + m - 1) // m) * m


def _vmem_budget():
    """(vmem_limit_bytes, soft block budget) — generation-aware but conservative."""
    try:
        cap = pltpu.get_tpu_info().vmem_capacity_bytes
    except Exception:
        cap = 64 * 1024 * 1024                            # v7x-safe fallback
    limit = min(32 * 1024 * 1024, cap // 2)               # 32 MiB on v5e/v6e/v7x
    return limit, int(0.75 * limit)


def _pick_batch_block(N, H, W, Cin, r, budget_bytes):
    """Largest divisor of N whose per-step VMEM footprint fits the budget,
    capped at N//2 so the parallel grid axis has >=2 steps (v7x has 2 TCs)."""
    lane = 128
    wp_cin = _round_up((W + 2) * Cin, lane)
    cols = _round_up(r * W * r * Cin, lane)
    # nb-independent allocations: double-buffered bf16 weight + f32 bias.
    const = 2 * 3 * _round_up((W + 2) * Cin, 16) * cols * 2 + 2 * cols * 4
    per_n = (
        2 * (H + 2) * wp_cin * 2      # double-buffered bf16 input block
        + 2 * H * cols * 2            # double-buffered bf16 output block
        + H * cols * 4                # f32 accumulator
        + 2 * H * wp_cin * 2          # live per-dy bf16 LHS slice copies
    )
    avail = max(budget_bytes - const, per_n)
    nb = max(1, min(N, avail // per_n))
    nb = max(1, min(nb, max(1, N // 2)))                  # >=2 grid steps when N>=2
    while N % nb:
        nb -= 1
    return nb


def upsample_block(x_nchw, weight_hwio, bias, up_scale, is_act=False,
                   batch_block=None):
    """Forward pass of UpsampleBlock.

    x_nchw:      (N, Cin, H, W)              -- same convention as PyTorch.
    weight_hwio: (3, 3, Cin, Cin*up_scale^2) -- conv weight in HWIO layout.
    bias:        (Cin*up_scale^2,)
    returns:     (N, Cin, H*up_scale, W*up_scale)
    """
    N, Cin, H, W = x_nchw.shape
    r = up_scale
    Cout = Cin * r * r
    assert weight_hwio.shape == (3, 3, Cin, Cout)

    wp_cin = (W + 2) * Cin
    cols = r * W * r * Cin                                # == W * Cout

    limit_bytes, budget_bytes = _vmem_budget()
    nb = batch_block or _pick_batch_block(N, H, W, Cin, r, budget_bytes)
    while N % nb:
        nb -= 1

    # NCHW -> NHWC, pre-pad the 1-pixel halo on the small pre-upsample tensor,
    # pack (w, c) into the lane axis, cast to bf16 (halves input DMA and makes
    # the dy-slices MXU-ready with no in-kernel scratch / memset / rotate).
    x_nhwc = jnp.transpose(x_nchw, (0, 2, 3, 1))
    x_pad = jnp.pad(x_nhwc, ((0, 0), (1, 1), (1, 1), (0, 0)))
    x_packed = x_pad.reshape(N, H + 2, wp_cin).astype(jnp.bfloat16)

    w3d = _toeplitz_weight(weight_hwio.astype(jnp.float32), W, r).astype(jnp.bfloat16)
    b2d = _tiled_bias(bias.astype(jnp.float32), W, r, Cin)

    kernel = functools.partial(_upsample_conv_kernel,
                               H=H, Wp_cin=wp_cin, apply_relu=is_act)

    conv_out = pl.pallas_call(
        kernel,
        out_shape=jax.ShapeDtypeStruct((N * H, cols), jnp.bfloat16),
        grid_spec=pltpu.PrefetchScalarGridSpec(
            num_scalar_prefetch=0,
            grid=(N // nb,),
            in_specs=[
                pl.BlockSpec((nb, H + 2, wp_cin), lambda n: (n, 0, 0)),
                pl.BlockSpec((3, wp_cin, cols), lambda n: (0, 0, 0)),
                pl.BlockSpec((1, cols), lambda n: (0, 0)),
            ],
            out_specs=pl.BlockSpec((nb * H, cols), lambda n: (n, 0)),
        ),
        compiler_params=pltpu.CompilerParams(
            dimension_semantics=("parallel",),
            vmem_limit_bytes=limit_bytes),
    )(x_packed, w3d, b2d)

    # PixelShuffle is already folded into the column order (ry, w, rx, cin):
    # row (n*H + h), column group ry is upscaled NHWC row h*r + ry.  The reshape
    # below only merges adjacent dims (no data movement); one final NHWC->NCHW
    # transpose (fused with the cast back to x's dtype) remains.
    y = conv_out.reshape(N, H * r, W * r, Cin)
    y = jnp.transpose(y, (0, 3, 1, 2)).astype(x_nchw.dtype)
    return y


def _reference_upsample_block(x_nchw, weight, bias, up_scale, is_act):
    """Pure-JAX f32 reference (lax conv + pixel shuffle) for correctness checking."""
    N, Cin, H, W = x_nchw.shape
    r = up_scale
    y = jax.lax.conv_general_dilated(
        x_nchw.astype(jnp.float32), weight.astype(jnp.float32),
        window_strides=(1, 1), padding=((1, 1), (1, 1)),
        dimension_numbers=("NCHW", "HWIO", "NCHW"))
    y = y + bias.reshape(1, -1, 1, 1)
    y = y.reshape(N, Cin, r, r, H, W)
    y = jnp.transpose(y, (0, 1, 4, 2, 5, 3)).reshape(N, Cin, H * r, W * r)
    if is_act:
        y = jnp.maximum(y, 0.0)
    return y


if __name__ == "__main__":
    # Small shapes consistent with the module: batch=2, in_channels=4,
    # spatial=16x16, up_scale=2 -> conv out channels = 4 * 2**2 = 16.
    N, Cin, H, W = 2, 4, 16, 16
    up_scale = 2
    is_act = True
    Cout = Cin * up_scale ** 2

    key = jax.random.PRNGKey(0)
    kx, kw, kb = jax.random.split(key, 3)

    x = jax.random.normal(kx, (N, Cin, H, W), dtype=jnp.float32)
    # Conv2d(Cin, Cin*r^2, 3, padding=1)-style init, stored in HWIO layout.
    fan_in = Cin * 3 * 3
    bound = 1.0 / np.sqrt(fan_in)
    weight = jax.random.uniform(kw, (3, 3, Cin, Cout), dtype=jnp.float32,
                                minval=-bound, maxval=bound)
    bias = jax.random.uniform(kb, (Cout,), dtype=jnp.float32,
                              minval=-bound, maxval=bound)

    fwd = jax.jit(functools.partial(upsample_block, up_scale=up_scale,
                                    is_act=is_act))
    out = jax.block_until_ready(fwd(x, weight, bias))

    ref = _reference_upsample_block(x, weight, bias, up_scale, is_act)
    # bf16 MXU operands + bf16 conv-output store with f32 accumulation.
    np.testing.assert_allclose(np.asarray(out, dtype=np.float32),
                               np.asarray(ref, dtype=np.float32),
                               rtol=2e-2, atol=2e-2)
    assert out.shape == (N, Cin, H * up_scale, W * up_scale)

    print("KERNEL_OK")
</pallas_src>

<mosaic_0001>
module attributes {stable_mosaic.version = 11 : i64} {
  func.func @_upsample_conv_kernel(%arg0: i32, %arg1: memref<1x18x72xbf16, #tpu.memory_space<vmem>>, %arg2: memref<3x72x256xbf16, #tpu.memory_space<vmem>>, %arg3: memref<1x256xf32, #tpu.memory_space<vmem>>, %arg4: memref<16x256xbf16, #tpu.memory_space<vmem>>) attributes {dimension_semantics = [#tpu.dimension_semantics<parallel>], iteration_bounds = array<i64: 2>, scalar_prefetch = 0 : i64, scratch_operands = 0 : i64, tpu.core_type = #tpu.core_type<tc>, window_params = [{transform_indices = @transform_0, window_bounds = array<i64: 1, 18, 72>}, {pipeline_mode = #tpu.pipeline_mode<synchronous>, transform_indices = @transform_1, window_bounds = array<i64: 3, 72, 256>}, {pipeline_mode = #tpu.pipeline_mode<synchronous>, transform_indices = @transform_2, window_bounds = array<i64: 1, 256>}, {transform_indices = @transform_3, window_bounds = array<i64: 16, 256>}]} {
    %c0 = arith.constant 0 : index
    %c0_0 = arith.constant 0 : index
    %c0_1 = arith.constant 0 : index
    %0 = vector.load %arg1[%c0, %c0_0, %c0_1] : memref<1x18x72xbf16, #tpu.memory_space<vmem>>, vector<1x16x72xbf16>
    %1 = vector.shape_cast %0 : vector<1x16x72xbf16> to vector<16x72xbf16>
    %c0_2 = arith.constant 0 : index
    %c0_3 = arith.constant 0 : index
    %c0_4 = arith.constant 0 : index
    %2 = vector.load %arg2[%c0_2, %c0_3, %c0_4] : memref<3x72x256xbf16, #tpu.memory_space<vmem>>, vector<1x72x256xbf16>
    %3 = vector.shape_cast %2 : vector<1x72x256xbf16> to vector<72x256xbf16>
    %cst = arith.constant dense<0.000000e+00> : vector<16x256xf32>
    %4 = tpu.matmul %1, %3, %cst {dimension_numbers = #tpu.dot_dimension_numbers<[1], [0], [0], [1], [0, 0, 1, 1], [], []>} : vector<16x72xbf16>, vector<72x256xbf16>, vector<16x256xf32> -> vector<16x256xf32>
    %c0_5 = arith.constant 0 : index
    %c1 = arith.constant 1 : index
    %c0_6 = arith.constant 0 : index
    %5 = vector.load %arg1[%c0_5, %c1, %c0_6] : memref<1x18x72xbf16, #tpu.memory_space<vmem>>, vector<1x16x72xbf16>
    %6 = vector.shape_cast %5 : vector<1x16x72xbf16> to vector<16x72xbf16>
    %c1_7 = arith.constant 1 : index
    %c0_8 = arith.constant 0 : index
    %c0_9 = arith.constant 0 : index
    %7 = vector.load %arg2[%c1_7, %c0_8, %c0_9] : memref<3x72x256xbf16, #tpu.memory_space<vmem>>, vector<1x72x256xbf16>
    %8 = vector.shape_cast %7 : vector<1x72x256xbf16> to vector<72x256xbf16>
    %cst_10 = arith.constant dense<0.000000e+00> : vector<16x256xf32>
    %9 = tpu.matmul %6, %8, %cst_10 {dimension_numbers = #tpu.dot_dimension_numbers<[1], [0], [0], [1], [0, 0, 1, 1], [], []>} : vector<16x72xbf16>, vector<72x256xbf16>, vector<16x256xf32> -> vector<16x256xf32>
    %10 = arith.addf %4, %9 : vector<16x256xf32>
    %c0_11 = arith.constant 0 : index
    %c2 = arith.constant 2 : index
    %c0_12 = arith.constant 0 : index
    %11 = vector.load %arg1[%c0_11, %c2, %c0_12] : memref<1x18x72xbf16, #tpu.memory_space<vmem>>, vector<1x16x72xbf16>
    %12 = vector.shape_cast %11 : vector<1x16x72xbf16> to vector<16x72xbf16>
    %c2_13 = arith.constant 2 : index
    %c0_14 = arith.constant 0 : index
    %c0_15 = arith.constant 0 : index
    %13 = vector.load %arg2[%c2_13, %c0_14, %c0_15] : memref<3x72x256xbf16, #tpu.memory_space<vmem>>, vector<1x72x256xbf16>
    %14 = vector.shape_cast %13 : vector<1x72x256xbf16> to vector<72x256xbf16>
    %cst_16 = arith.constant dense<0.000000e+00> : vector<16x256xf32>
    %15 = tpu.matmul %12, %14, %cst_16 {dimension_numbers = #tpu.dot_dimension_numbers<[1], [0], [0], [1], [0, 0, 1, 1], [], []>} : vector<16x72xbf16>, vector<72x256xbf16>, vector<16x256xf32> -> vector<16x256xf32>
    %16 = arith.addf %10, %15 : vector<16x256xf32>
    %c0_17 = arith.constant 0 : index
    %c0_18 = arith.constant 0 : index
    %17 = vector.load %arg3[%c0_17, %c0_18] : memref<1x256xf32, #tpu.memory_space<vmem>>, vector<1x256xf32>
    %18 = vector.broadcast %17 : vector<1x256xf32> to vector<16x256xf32>
    %19 = arith.addf %16, %18 : vector<16x256xf32>
    %cst_19 = arith.constant 0.000000e+00 : f32
    %20 = vector.broadcast %cst_19 : f32 to vector<16x256xf32>
    %21 = arith.maximumf %19, %20 : vector<16x256xf32>
    %22 = arith.truncf %21 : vector<16x256xf32> to vector<16x256xbf16>
    %c0_20 = arith.constant 0 : index
    %c0_21 = arith.constant 0 : index
    %23 = vector.load %arg4[%c0_20, %c0_21] : memref<16x256xbf16, #tpu.memory_space<vmem>>, vector<16x256xbf16>
    tpu.vector_store %arg4[%c0_20, %c0_21], %22 {strides = array<i32>} : memref<16x256xbf16, #tpu.memory_space<vmem>>, vector<16x256xbf16>,
    return
  }
  func.func @transform_0(%arg0: i32) -> (i32, i32, i32) {
    %c0_i32 = arith.constant 0 : i32
    %c0_i32_0 = arith.constant 0 : i32
    %c0_i32_1 = arith.constant 0 : i32
    return %arg0, %c0_i32, %c0_i32_0 : i32, i32, i32
  }
  func.func @transform_1(%arg0: i32) -> (i32, i32, i32) {
    %c0_i32 = arith.constant 0 : i32
    %c0_i32_0 = arith.constant 0 : i32
    %c0_i32_1 = arith.constant 0 : i32
    %c0_i32_2 = arith.constant 0 : i32
    return %c0_i32, %c0_i32_0, %c0_i32_1 : i32, i32, i32
  }
  func.func @transform_2(%arg0: i32) -> (i32, i32) {
    %c0_i32 = arith.constant 0 : i32
    %c0_i32_0 = arith.constant 0 : i32
    %c0_i32_1 = arith.constant 0 : i32
    return %c0_i32, %c0_i32_0 : i32, i32
  }
  func.func @transform_3(%arg0: i32) -> (i32, i32) {
    %c0_i32 = arith.constant 0 : i32
    %c0_i32_0 = arith.constant 0 : i32
    return %arg0, %c0_i32 : i32, i32
  }
}

</mosaic_0001>

<llo_original>
// kernel: upsample_block.1
$region0: #{upsample_block.1}
  #allocation0 [shape = 'u32[]', space=smem, size = 0x4, offset = 0x4, fixed_abs, tag = 'smem constant byte address 0x4 - core index']
  #allocation1 [shape = 'u32[72,128]{1,0:T(1,128)}', space=vmem, size = 0x9000, scoped, tag = 'internal scratch']
  %s0 = inlined_call_operand.vmem [shape: bf16[2,18,72], index: 0, kind: input, shape index: {}]
  %s1 = inlined_call_operand.vmem [shape: bf16[3,72,256], index: 1, kind: input, shape index: {}]
  %s2 = inlined_call_operand.vmem [shape: f32[1,256], index: 2, kind: input, shape index: {}]
  %s3 = inlined_call_operand.vmem [shape: bf16[32,256], index: 3, kind: output, shape index: {}]
  %s4 = sld [smem:[#allocation0]]
  $region45: #{upsample_block.1} parent=0
    _
  %s6 = ssub.s32 1, %s4
  %s7 = scalar_select 0, %s6, %s4
  loop: start=0, step=1, limit=4
  $region2: #{upsample_block.1} parent=0 // loop_pre_header
    _
  $region3: #{upsample_block.1} parent=0 // loop_header
    %s9 = sphi 0, %s13
    %p10 = scmp.ge.s32.totalorder %s9, 4
    %s19 = sphi 0, %s21
    %s22 = sphi 0, %s19
    %s23 = sphi 0, %s22
    %s39 = sphi 0, %s23
    %s43 = sphi 0, %s43
    %s45 = sphi 0, %s43
    %s46 = sphi 0, %s45
    %s60 = sphi 0, %s46
    %s64 = sphi 0, %s64
    %s66 = sphi 0, %s64
    %s67 = sphi 0, %s66
    %s81 = sphi 0, %s67
    %s87 = sphi 0, %s89
    %s90 = sphi 0, %s87
    %s91 = sphi 0, %s90
    %s107 = sphi 0, %s91
  $region4: #{upsample_block.1} parent=0 // loop_header_branch
    %12 = sbr.rel (%p10) target = $region8
  $region5: #{upsample_block.1} parent=0 // loop_body
    %s14 = ssub.s32 %s9, 1
    %s15 = ssub.s32 %s9, 2
    %s16 = sadd.s32 %s9, 1
    %s17 = ssub.s32 %s9, %s16
    %p18 = scmp.eq.s32.totalorder %s17, 0
    %s20 = sadd.s32 %s19, 1
    %s21 = scalar_select %p18, %s19, %s20
    %p24 = pneg %p18
    %p25 = scmp.eq.s32.totalorder %s9, 1
    %p26 = por %p24, %p25
    %p27 = scmp.ne.s32.totalorder %s19, %s22
    %p28 = scmp.eq.s32.totalorder %s9, 0
    %p29 = por %p27, %p28
    %p30 = scmp.ne.s32.totalorder %s19, %s22
    %p31 = scmp.eq.s32.totalorder %s14, 1
    %p32 = por %p30, %p31
    %p33 = scmp.ne.s32.totalorder %s22, %s23
    %p34 = scmp.eq.s32.totalorder %s14, 0
    %p35 = por %p33, %p34
    %p36 = scmp.ne.s32.totalorder %s22, %s23
    %p37 = scmp.eq.s32.totalorder %s15, 1
    %p38 = por %p36, %p37
    %p40 = scmp.ne.s32.totalorder %s23, %s39
    %p41 = scmp.eq.s32.totalorder %s15, 0
    %p42 = por %p40, %p41
    %s44 = sadd.s32 %s43, 1
    %p47 = scmp.eq.s32.totalorder %s9, 1
    %p48 = scmp.ne.s32.totalorder %s43, %s45
    %p49 = scmp.eq.s32.totalorder %s9, 0
    %p50 = por %p48, %p49
    %p51 = scmp.ne.s32.totalorder %s43, %s45
    %p52 = scmp.eq.s32.totalorder %s14, 1
    %p53 = por %p51, %p52
    %p54 = scmp.ne.s32.totalorder %s45, %s46
    %p55 = scmp.eq.s32.totalorder %s14, 0
    %p56 = por %p54, %p55
    %p57 = scmp.ne.s32.totalorder %s45, %s46
    %p58 = scmp.eq.s32.totalorder %s15, 1
    %p59 = por %p57, %p58
    %p61 = scmp.ne.s32.totalorder %s46, %s60
    %p62 = scmp.eq.s32.totalorder %s15, 0
    %p63 = por %p61, %p62
    %s65 = sadd.s32 %s64, 1
    %p68 = scmp.eq.s32.totalorder %s9, 1
    %p69 = scmp.ne.s32.totalorder %s64, %s66
    %p70 = scmp.eq.s32.totalorder %s9, 0
    %p71 = por %p69, %p70
    %p72 = scmp.ne.s32.totalorder %s64, %s66
    %p73 = scmp.eq.s32.totalorder %s14, 1
    %p74 = por %p72, %p73
    %p75 = scmp.ne.s32.totalorder %s66, %s67
    %p76 = scmp.eq.s32.totalorder %s14, 0
    %p77 = por %p75, %p76
    %p78 = scmp.ne.s32.totalorder %s66, %s67
    %p79 = scmp.eq.s32.totalorder %s15, 1
    %p80 = por %p78, %p79
    %p82 = scmp.ne.s32.totalorder %s67, %s81
    %p83 = scmp.eq.s32.totalorder %s15, 0
    %p84 = por %p82, %p83
    %s85 = ssub.s32 %s9, %s16
    %p86 = scmp.eq.s32.totalorder %s85, 0
    %s88 = sadd.s32 %s87, 1
    %s89 = scalar_select %p86, %s87, %s88
    %p92 = pneg %p86
    %p93 = scmp.eq.s32.totalorder %s9, 1
    %p94 = por %p92, %p93
    %p95 = scmp.ne.s32.totalorder %s87, %s90
    %p96 = scmp.eq.s32.totalorder %s9, 0
    %p97 = por %p95, %p96
    %p98 = scmp.ne.s32.totalorder %s87, %s90
    %p99 = scmp.eq.s32.totalorder %s14, 1
    %p100 = por %p98, %p99
    %p101 = scmp.ne.s32.totalorder %s90, %s91
    %p102 = scmp.eq.s32.totalorder %s14, 0
    %p103 = por %p101, %p102
    %p104 = scmp.ne.s32.totalorder %s90, %s91
    %p105 = scmp.eq.s32.totalorder %s15, 1
    %p106 = por %p104, %p105
    %p108 = scmp.ne.s32.totalorder %s91, %s107
    %p109 = scmp.eq.s32.totalorder %s15, 0
    %p110 = por %p108, %p109
    %p111 = scmp.le.s32.totalorder 1, %s9
    %p112 = scmp.lt.s32.totalorder %s9, 3
    %p113 = pnand %p111, %p112
    %p114 = pneg %p113
    // Predicated region
    $region9: #{upsample_block.1} parent=5 // pred_check
      _
    $region10: #{upsample_block.1} parent=5 // pred_check_branch
      %116 = sbr.rel (%p113) target = $region12
    $region11: #{upsample_block.1} parent=5 // pred_region
      %s117 = ssub.s32 %s9, 1
      // Predicated region
      $region13: #{upsample_block.1} parent=11 // pred_check
        %p118 = pneg %p56
      $region14: #{upsample_block.1} parent=11 // pred_check_branch
        %120 = sbr.rel (%p118) target = $region16
      $region15: #{upsample_block.1} parent=11 // pred_region
        _
      $region16: #{upsample_block.1} parent=11 // pred_fallthru
        _
      // Predicated region
      $region17: #{upsample_block.1} parent=11 // pred_check
        %p121 = pneg %p77
      $region18: #{upsample_block.1} parent=11 // pred_check_branch
        %123 = sbr.rel (%p121) target = $region20
      $region19: #{upsample_block.1} parent=11 // pred_region
        _
      $region20: #{upsample_block.1} parent=11 // pred_fallthru
        _
    $region12: #{upsample_block.1} parent=5 // pred_fallthru
      _
    %p124 = scmp.lt.s32.totalorder %s9, 2
    // Predicated region
    $region21: #{upsample_block.1} parent=5 // pred_check
      %p125 = pneg %p124
    $region22: #{upsample_block.1} parent=5 // pred_check_branch
      %127 = sbr.rel (%p125) target = $region24
    $region23: #{upsample_block.1} parent=5 // pred_region
      // Predicated region
      $region25: #{upsample_block.1} parent=23 // pred_check
        %p128 = pneg %p29
      $region26: #{upsample_block.1} parent=23 // pred_check_branch
        %130 = sbr.rel (%p128) target = $region28
      $region27: #{upsample_block.1} parent=23 // pred_region
        %p131 = scmp.lt.s32.totalorder %s9, 1
        %s132 = scalar_select %p131, %s9, 1
        %s133 = smul.addr %s132, 3
        %s134 = smul.addr %s133, 4
        %s135 = scalar_lea.vmem %s0, %s134
      $region28: #{upsample_block.1} parent=23 // pred_fallthru
        _
    $region24: #{upsample_block.1} parent=5 // pred_fallthru
      _
    %p136 = scmp.le.s32.totalorder 1, %s9
    %p137 = scmp.lt.s32.totalorder %s9, 3
    %p138 = pnand %p136, %p137
    %p139 = pneg %p138
    // Predicated region
    $region29: #{upsample_block.1} parent=5 // pred_check
      _
    $region30: #{upsample_block.1} parent=5 // pred_check_branch
      %141 = sbr.rel (%p138) target = $region32
    $region31: #{upsample_block.1} parent=5 // pred_region
      %s142 = ssub.s32 %s9, 1
      %p143 = scmp.lt.s32.totalorder %s14, 1
      %s144 = scalar_select %p143, %s14, 1
      %s145 = smul.addr %s144, 3
      %s146 = smul.addr %s145, 4
      %s147 = scalar_lea.vmem %s0, %s146
      %p148 = pneg %p35
      %p149 = pneg %p32
      %p150 = pneg %p56
      %p151 = pneg %p53
      %p152 = pneg %p77
      %p153 = pneg %p74
      %p154 = pneg %p103
      %p155 = pneg %p100
      %s156 = smul.u32 2, %s14
      %p157 = scmp.lt.s32.totalorder %s156, 3
      %s158 = scalar_select %p157, %s156, 3
      %s159 = smul.addr %s158, 2
      %s160 = smul.addr %s159, 4
      %s161 = scalar_lea.vmem %s3, %s160
      %p162 = scmp.lt.s32.totalorder %s14, 1
      %s163 = scalar_select %p162, %s14, 1
      %s164 = smul.addr %s163, 3
      %s165 = smul.addr %s164, 4
      %s166 = scalar_lea.vmem %s0, %s165
      %s167 = smul.u32 2, %s14
      %p168 = scmp.lt.s32.totalorder %s167, 3
      %s169 = scalar_select %p168, %s167, 3
      %s170 = smul.addr %s169, 2
      %s171 = smul.addr %s170, 4
      %s172 = scalar_lea.vmem %s3, %s171
      %s173 = smul.u32 2, %s14
      %v175 = vld [vmem:[%s166] sm:$0xf]
      %v176 = vld [vmem:[%s166 + $0x4] sm:$0xf]
      %v177 = vld [vmem:[%s1] sm:$0xff]
      %v178 = vld [vmem:[%s1 + $0x8] sm:$0xff]
      %v179 = vld [vmem:[%s1 + $0x10] sm:$0xff]
      %v180 = vld [vmem:[%s1 + $0x18] sm:$0xff]
      %v181 = vld [vmem:[%s1 + $0x20] sm:$0xff]
      %v182 = vld [vmem:[%s1 + $0x28] sm:$0xff]
      %v183 = vld [vmem:[%s1 + $0x30] sm:$0xff]
      %v184 = vld [vmem:[%s1 + $0x38] sm:$0xff]
      %v185 = vld [vmem:[%s1 + $0x40] sm:$0xff]
      %v186 = vld [vmem:[%s166 + $0x8] sm:$0x1]
      %s187 = scalar_lea.vmem %s1, 72
      %v188 = vld [vmem:[%s187] sm:$0xff]
      %v189 = vld [vmem:[%s187 + $0x8] sm:$0xff]
      %v190 = vld [vmem:[%s187 + $0x10] sm:$0xff]
      %v191 = vld [vmem:[%s187 + $0x18] sm:$0xff]
      %v192 = vld [vmem:[%s187 + $0x20] sm:$0xff]
      %v193 = vld [vmem:[%s187 + $0x28] sm:$0xff]
      %v194 = vld [vmem:[%s187 + $0x30] sm:$0xff]
      %v195 = vld [vmem:[%s187 + $0x38] sm:$0xff]
      %v196 = vld [vmem:[%s187 + $0x40] sm:$0xff]
      %v200 = vunpack.c.l.b16 %v175
      %v201 = vunpack.c.l.b16 %v176
      %v202 = vunpack.c.l.b16 %v186
      %v203 = vpack.c.b16 %v201, %v200
      %v204 = vpack.c.b16 %v202, %v202
      %vm205 = vsmask.f32 7424
      %v207 = vshrl.u32 %v203, 16
      %v209 = vshll.u32 %v203, 16
      %v211 = vrot.slane %v209, 1
      %v212 = vor.u32 %v207, %v211
      %v214 = vshll.u32 %v204, 16
      %v216 = vrot.slane %v214, 1
      %v217 = vsel %vm205, %v212, %v216
      %v227 = vunpack.c.l.b16 %v188
      %v228 = vunpack.c.h.b16 %v188
      %v229 = vunpack.c.l.b16 %v189
      %v230 = vunpack.c.h.b16 %v189
      %v231 = vunpack.c.l.b16 %v190
      %v232 = vunpack.c.h.b16 %v190
      %v233 = vunpack.c.l.b16 %v191
      %v234 = vunpack.c.h.b16 %v191
      %v235 = vunpack.c.l.b16 %v192
      %v236 = vunpack.c.h.b16 %v192
      %v237 = vunpack.c.l.b16 %v193
      %v238 = vunpack.c.h.b16 %v193
      %v239 = vunpack.c.l.b16 %v194
      %v240 = vunpack.c.h.b16 %v194
      %v241 = vunpack.c.l.b16 %v195
      %v242 = vunpack.c.h.b16 %v195
      %v243 = vunpack.c.l.b16 %v196
      %v244 = vunpack.c.h.b16 %v196
      %v245 = vpack.c.b16 %v229, %v227
      %v246 = vpack.c.b16 %v230, %v228
      %v247 = vpack.c.b16 %v233, %v231
      %v248 = vpack.c.b16 %v234, %v232
      %v249 = vpack.c.b16 %v237, %v235
      %v250 = vpack.c.b16 %v238, %v236
      %v251 = vpack.c.b16 %v241, %v239
      %v252 = vpack.c.b16 %v242, %v240
      %v253 = vpack.c.b16 %v243, %v243
      %v254 = vpack.c.b16 %v244, %v244
      %vm263 = vcmask 588800
      %v265 = vsel %vm263, %v217, 0
      %vm267 = vcmask 1043456
      %v269 = vsel %vm267, %v253, 0
      %v272 = vsel %vm267, %v254, 0
      %274 = vmatpush.bf16.msra.mxu0 0
      %275 = vmatpush.bf16.msra.mxu0 0
      %276 = vmatpush.bf16.msra.mxu0 0
      %277 = vmatpush.bf16.msra.mxu0 %v269
      %278 = vmatpush.bf16.msra.mxu0 %v251
      %279 = vmatpush.bf16.msra.mxu0 %v249
      %280 = vmatpush.bf16.msra.mxu0 %v247
      %281 = vmatpush.bf16.msra.mxu0 %v245
      %282 = vmatmul.bf16.gmra.mxu0 %v265
      %v283 = vpop.f32.mrf.mxu0
      %v284 = vadd.f32 0.0, %v283
      %v285 = vpop.f32.mrf.mxu0
      %v286 = vadd.f32 0.0, %v285
      %287 = vdwg.mxu0
      %288 = vmatpush.bf16.msra.mxu0 0
      %289 = vmatpush.bf16.msra.mxu0 0
      %290 = vmatpush.bf16.msra.mxu0 0
      %291 = vmatpush.bf16.msra.mxu0 %v272
      %292 = vmatpush.bf16.msra.mxu0 %v252
      %293 = vmatpush.bf16.msra.mxu0 %v250
      %294 = vmatpush.bf16.msra.mxu0 %v248
      %295 = vmatpush.bf16.msra.mxu0 %v246
      %296 = vmatmul.bf16.gmra.mxu0 %v265
      %v297 = vpop.f32.mrf.mxu0
      %v298 = vadd.f32 0.0, %v297
      %v299 = vpop.f32.mrf.mxu0
      %v300 = vadd.f32 0.0, %v299
      %301 = vdwg.mxu0
      %v311 = vunpack.c.l.b16 %v177
      %v312 = vunpack.c.h.b16 %v177
      %v313 = vunpack.c.l.b16 %v178
      %v314 = vunpack.c.h.b16 %v178
      %v315 = vunpack.c.l.b16 %v179
      %v316 = vunpack.c.h.b16 %v179
      %v317 = vunpack.c.l.b16 %v180
      %v318 = vunpack.c.h.b16 %v180
      %v319 = vunpack.c.l.b16 %v181
      %v320 = vunpack.c.h.b16 %v181
      %v321 = vunpack.c.l.b16 %v182
      %v322 = vunpack.c.h.b16 %v182
      %v323 = vunpack.c.l.b16 %v183
      %v324 = vunpack.c.h.b16 %v183
      %v325 = vunpack.c.l.b16 %v184
      %v326 = vunpack.c.h.b16 %v184
      %v327 = vunpack.c.l.b16 %v185
      %v328 = vunpack.c.h.b16 %v185
      %v329 = vpack.c.b16 %v313, %v311
      %v330 = vpack.c.b16 %v314, %v312
      %v331 = vpack.c.b16 %v317, %v315
      %v332 = vpack.c.b16 %v318, %v316
      %v333 = vpack.c.b16 %v321, %v319
      %v334 = vpack.c.b16 %v322, %v320
      %v335 = vpack.c.b16 %v325, %v323
      %v336 = vpack.c.b16 %v326, %v324
      %v337 = vpack.c.b16 %v327, %v327
      %v338 = vpack.c.b16 %v328, %v328
      %v347 = vsel %vm263, %v203, 0
      %v350 = vsel %vm267, %v337, 0
      %v353 = vsel %vm267, %v338, 0
      %355 = vmatpush.bf16.msra.mxu0 0
      %356 = vmatpush.bf16.msra.mxu0 0
      %357 = vmatpush.bf16.msra.mxu0 0
      %358 = vmatpush.bf16.msra.mxu0 %v350
      %359 = vmatpush.bf16.msra.mxu0 %v335
      %360 = vmatpush.bf16.msra.mxu0 %v333
      %361 = vmatpush.bf16.msra.mxu0 %v331
      %362 = vmatpush.bf16.msra.mxu0 %v329
      %363 = vmatmul.bf16.gmra.mxu0 %v347
      %v364 = vpop.f32.mrf.mxu0
      %v365 = vadd.f32 %v284, %v364
      %v366 = vpop.f32.mrf.mxu0
      %v367 = vadd.f32 %v286, %v366
      %368 = vdwg.mxu0
      %369 = vmatpush.bf16.msra.mxu0 0
      %370 = vmatpush.bf16.msra.mxu0 0
      %371 = vmatpush.bf16.msra.mxu0 0
      %372 = vmatpush.bf16.msra.mxu0 %v353
      %373 = vmatpush.bf16.msra.mxu0 %v336
      %374 = vmatpush.bf16.msra.mxu0 %v334
      %375 = vmatpush.bf16.msra.mxu0 %v332
      %376 = vmatpush.bf16.msra.mxu0 %v330
      %377 = vmatmul.bf16.gmra.mxu0 %v347
      %v378 = vpop.f32.mrf.mxu0
      %v379 = vadd.f32 %v298, %v378
      %v380 = vpop.f32.mrf.mxu0
      %v381 = vadd.f32 %v300, %v380
      %382 = vdwg.mxu0
      %v383 = vld [vmem:[%s166] sm:$0xe]
      %s384 = scalar_lea.vmem %s1, 144
      %v385 = vld [vmem:[%s384] sm:$0xff]
      %v386 = vld [vmem:[%s384 + $0x8] sm:$0xff]
      %v387 = vld [vmem:[%s384 + $0x10] sm:$0xff]
      %v388 = vld [vmem:[%s384 + $0x18] sm:$0xff]
      %v389 = vld [vmem:[%s384 + $0x20] sm:$0xff]
      %v390 = vld [vmem:[%s384 + $0x28] sm:$0xff]
      %v391 = vld [vmem:[%s384 + $0x30] sm:$0xff]
      %v392 = vld [vmem:[%s384 + $0x38] sm:$0xff]
      %v393 = vld [vmem:[%s384 + $0x40] sm:$0xff]
      %v395 = vunpack.c.l.b16 %v383
      %v396 = vpack.c.b16 %v201, %v395
      %vm397 = vcmask 1046528
      %v398 = vrot.slane %v396, 1
      %v399 = vrot.slane %v204, 1
      %v400 = vsel %vm397, %v398, %v399
      %v410 = vunpack.c.l.b16 %v385
      %v411 = vunpack.c.h.b16 %v385
      %v412 = vunpack.c.l.b16 %v386
      %v413 = vunpack.c.h.b16 %v386
      %v414 = vunpack.c.l.b16 %v387
      %v415 = vunpack.c.h.b16 %v387
      %v416 = vunpack.c.l.b16 %v388
      %v417 = vunpack.c.h.b16 %v388
      %v418 = vunpack.c.l.b16 %v389
      %v419 = vunpack.c.h.b16 %v389
      %v420 = vunpack.c.l.b16 %v390
      %v421 = vunpack.c.h.b16 %v390
      %v422 = vunpack.c.l.b16 %v391
      %v423 = vunpack.c.h.b16 %v391
      %v424 = vunpack.c.l.b16 %v392
      %v425 = vunpack.c.h.b16 %v392
      %v426 = vunpack.c.l.b16 %v393
      %v427 = vunpack.c.h.b16 %v393
      %v428 = vpack.c.b16 %v412, %v410
      %v429 = vpack.c.b16 %v413, %v411
      %v430 = vpack.c.b16 %v416, %v414
      %v431 = vpack.c.b16 %v417, %v415
      %v432 = vpack.c.b16 %v420, %v418
      %v433 = vpack.c.b16 %v421, %v419
      %v434 = vpack.c.b16 %v424, %v422
      %v435 = vpack.c.b16 %v425, %v423
      %v436 = vpack.c.b16 %v426, %v426
      %v437 = vpack.c.b16 %v427, %v427
      %v447 = vsel %vm263, %v400, 0
      %v450 = vsel %vm267, %v436, 0
      %v453 = vsel %vm267, %v437, 0
      %455 = vmatpush.bf16.msra.mxu0 0
      %456 = vmatpush.bf16.msra.mxu0 0
      %457 = vmatpush.bf16.msra.mxu0 0
      %458 = vmatpush.bf16.msra.mxu0 %v450
      %459 = vmatpush.bf16.msra.mxu0 %v434
      %460 = vmatpush.bf16.msra.mxu0 %v432
      %461 = vmatpush.bf16.msra.mxu0 %v430
      %462 = vmatpush.bf16.msra.mxu0 %v428
      %463 = vmatmul.bf16.gmra.mxu0 %v447
      %v464 = vpop.f32.mrf.mxu0
      %v465 = vadd.f32 0.0, %v464
      %v466 = vpop.f32.mrf.mxu0
      %v467 = vadd.f32 0.0, %v466
      %468 = vdwg.mxu0
      %469 = vmatpush.bf16.msra.mxu0 0
      %470 = vmatpush.bf16.msra.mxu0 0
      %471 = vmatpush.bf16.msra.mxu0 0
      %472 = vmatpush.bf16.msra.mxu0 %v453
      %473 = vmatpush.bf16.msra.mxu0 %v435
      %474 = vmatpush.bf16.msra.mxu0 %v433
      %475 = vmatpush.bf16.msra.mxu0 %v431
      %476 = vmatpush.bf16.msra.mxu0 %v429
      %477 = vmatmul.bf16.gmra.mxu0 %v447
      %v478 = vpop.f32.mrf.mxu0
      %v479 = vadd.f32 0.0, %v478
      %v480 = vpop.f32.mrf.mxu0
      %v481 = vadd.f32 0.0, %v480
      %482 = vdwg.mxu0
      %v483 = vadd.f32 %v365, %v465
      %v484 = vadd.f32 %v379, %v479
      %v485 = vadd.f32 %v367, %v467
      %v486 = vadd.f32 %v381, %v481
      %v487 = vld [vmem:[%s2] sm:$0x3]
      %v489 = vperm.slane %v487, 0
      %v490 = vperm.slane %v487, 1
      %v493 = vadd.f32 %v483, %v489
      %v494 = vadd.f32 %v484, %v490
      %v495 = vadd.f32 %v485, %v489
      %v496 = vadd.f32 %v486, %v490
      %v497 = vmax.f32 %v493, 0.0
      %v498 = vmax.f32 %v494, 0.0
      %v499 = vmax.f32 %v495, 0.0
      %v500 = vmax.f32 %v496, 0.0
      %v501 = vpack.c.bf16 %v498, %v497
      %v502 = vpack.c.bf16 %v500, %v499
      %503 = vst [vmem:[%s172] sm:$0xff] %v501
      %504 = vst [vmem:[%s172 + $0x8] sm:$0xff] %v502
      %s505 = smul.u32 2, %s14
      %p506 = scmp.lt.s32.totalorder %s505, 3
      %s507 = scalar_select %p506, %s505, 3
      %s508 = smul.addr %s507, 2
      %s509 = smul.addr %s508, 4
      %s510 = scalar_lea.vmem %s3, %s509
      // Predicated region
      $region33: #{upsample_block.1} parent=31 // pred_check
        %p511 = pneg %p100
      $region34: #{upsample_block.1} parent=31 // pred_check_branch
        %513 = sbr.rel (%p511) target = $region36
      $region35: #{upsample_block.1} parent=31 // pred_region
        %s514 = smul.u32 2, %s14
      $region36: #{upsample_block.1} parent=31 // pred_fallthru
        _
    $region32: #{upsample_block.1} parent=5 // pred_fallthru
      _
    %p515 = scmp.le.s32.totalorder 2, %s9
    // Predicated region
    $region37: #{upsample_block.1} parent=5 // pred_check
      %p516 = pneg %p515
    $region38: #{upsample_block.1} parent=5 // pred_check_branch
      %518 = sbr.rel (%p516) target = $region40
    $region39: #{upsample_block.1} parent=5 // pred_region
      %s519 = ssub.s32 %s9, 2
      // Predicated region
      $region41: #{upsample_block.1} parent=39 // pred_check
        %p520 = pneg %p106
      $region42: #{upsample_block.1} parent=39 // pred_check_branch
        %522 = sbr.rel (%p520) target = $region44
      $region43: #{upsample_block.1} parent=39 // pred_region
        %s523 = smul.u32 2, %s15
        %p524 = scmp.lt.s32.totalorder %s523, 3
        %s525 = scalar_select %p524, %s523, 3
        %s526 = smul.addr %s525, 2
        %s527 = smul.addr %s526, 4
        %s528 = scalar_lea.vmem %s3, %s527
      $region44: #{upsample_block.1} parent=39 // pred_fallthru
        _
    $region40: #{upsample_block.1} parent=5 // pred_fallthru
      _
  $region6: #{upsample_block.1} parent=0 // loop_footer
    %s13 = sadd.s32 1, %s9
  $region7: #{upsample_block.1} parent=0 // loop_footer_branch
    %8 = sbr.rel target = $region3
  $region8: #{upsample_block.1} parent=0 // loop_exit
    _

</llo_original>
